<compile_context>
chip_gen: v7x
topology: tpu7x:2x2x1
jax: 0.10.0
libtpu: 0.0.40
codegen_flags: <defaults>
</compile_context>

<pallas_src>
import functools

import jax
import jax.numpy as jnp
from jax.experimental import pallas as pl
from jax.experimental.pallas import tpu as pltpu

BN_EPS = 1e-5


def _pick_spatial_tile(total, max_tile=1024):
    """Largest divisor of `total` that is a power-of-two multiple of 8 and <= max_tile."""
    if total <= max_tile:
        return total
    for cand in (1024, 512, 256, 128, 64, 32, 16, 8):
        if cand <= max_tile and total % cand == 0:
            return cand
    return total


# --------------------------------------------------------------------------- #
# Kernels
# --------------------------------------------------------------------------- #
def _se_mlp(gp, w1_ref, s1_ref, sh1_ref, w2_ref, b2_ref):
    """(1, C) pooled features -> (1, C) sigmoid gate. bf16 MXU, f32 accumulate."""
    h = jnp.dot(gp.astype(jnp.bfloat16), w1_ref[...],
                preferred_element_type=jnp.float32)
    h = jnp.maximum(h * s1_ref[...] + sh1_ref[...], 0.0)        # folded BN + ReLU
    se = jnp.dot(h.astype(jnp.bfloat16), w2_ref[...],
                 preferred_element_type=jnp.float32)
    return jax.nn.sigmoid(se + b2_ref[...])


def _channelatt_fused_kernel(x_ref, w1_ref, s1_ref, sh1_ref, w2_ref, b2_ref,
                             y_ref, *, inv_hw):
    """One batch element per grid step.  x_ref: (1, H*W, C)."""
    x = x_ref[0]                                                # (HW, C) f32
    gp = jnp.sum(x, axis=0, keepdims=True) * inv_hw             # (1, C)
    se = _se_mlp(gp, w1_ref, s1_ref, sh1_ref, w2_ref, b2_ref)   # (1, C)
    y_ref[0] = x * se


def _se_tiled_kernel(x_ref, w1_ref, s1_ref, sh1_ref, w2_ref, b2_ref,
                     se_ref, acc_ref, *, inv_hw):
    """GAP over spatial tiles (reduction grid axis) + SE MLP at the last tile."""
    s = pl.program_id(1)

    @pl.when(s == 0)
    def _():
        acc_ref[...] = jnp.zeros_like(acc_ref)

    acc_ref[...] += jnp.sum(x_ref[0], axis=0, keepdims=True)    # (1, C)

    @pl.when(s == pl.num_programs(1) - 1)
    def _():
        gp = acc_ref[...] * inv_hw
        se_ref[...] = _se_mlp(gp, w1_ref, s1_ref, sh1_ref, w2_ref, b2_ref)


def _scale_kernel(x_ref, se_ref, y_ref):
    """y = x * se, broadcast over the spatial tile.  Lane-dense (C last)."""
    y_ref[...] = x_ref[...] * se_ref[...]


# --------------------------------------------------------------------------- #
# Wrappers
# --------------------------------------------------------------------------- #
def _folded_affine(params):
    """Fold inference-mode BN + conv1 bias into a per-channel scale/shift."""
    s1 = params["bn_gamma"] * jax.lax.rsqrt(params["bn_var"] + BN_EPS)
    sh1 = (params["b1"] - params["bn_mean"]) * s1 + params["bn_beta"]
    return s1, sh1


def channelatt_nhwc(params, x, *, two_pass=None,
                    fused_vmem_budget_bytes=8 * 1024 * 1024):
    """Channelatt forward on an NHWC tensor -> NHWC tensor."""
    N, H, W, C = x.shape
    mid = params["w1"].shape[1]
    HW = H * W

    x2 = x.reshape(N, HW, C)
    w1 = params["w1"].astype(jnp.bfloat16)                      # (C, mid)
    w2 = params["w2"].astype(jnp.bfloat16)                      # (mid, C)
    s1, sh1 = _folded_affine(params)
    s1 = s1.reshape(1, mid).astype(jnp.float32)
    sh1 = sh1.reshape(1, mid).astype(jnp.float32)
    b2 = params["b2"].reshape(1, C).astype(jnp.float32)

    if two_pass is None:
        # Per-image slab must fit comfortably in VMEM for the fully fused path
        # (stays well under v7x's 64 MiB; no vmem_limit override needed).
        two_pass = (HW * C * 4) > fused_vmem_budget_bytes

    if not two_pass:
        y = pl.pallas_call(
            functools.partial(_channelatt_fused_kernel, inv_hw=1.0 / HW),
            out_shape=jax.ShapeDtypeStruct((N, HW, C), jnp.float32),
            grid=(N,),
            in_specs=[
                pl.BlockSpec((1, HW, C), lambda n: (n, 0, 0)),
                pl.BlockSpec((C, mid), lambda n: (0, 0)),
                pl.BlockSpec((1, mid), lambda n: (0, 0)),
                pl.BlockSpec((1, mid), lambda n: (0, 0)),
                pl.BlockSpec((mid, C), lambda n: (0, 0)),
                pl.BlockSpec((1, C), lambda n: (0, 0)),
            ],
            out_specs=pl.BlockSpec((1, HW, C), lambda n: (n, 0, 0)),
            compiler_params=pltpu.CompilerParams(
                dimension_semantics=("parallel",)),
        )(x2, w1, s1, sh1, w2, b2)
        return y.reshape(N, H, W, C)

    # ---------------- tiled two-pass fallback (VMEM-bounded) ---------------- #
    ts = _pick_spatial_tile(HW)
    n_s = HW // ts

    se = pl.pallas_call(
        functools.partial(_se_tiled_kernel, inv_hw=1.0 / HW),
        out_shape=jax.ShapeDtypeStruct((N, C), jnp.float32),
        grid=(N, n_s),
        in_specs=[
            pl.BlockSpec((1, ts, C), lambda n, s: (n, s, 0)),
            pl.BlockSpec((C, mid), lambda n, s: (0, 0)),
            pl.BlockSpec((1, mid), lambda n, s: (0, 0)),
            pl.BlockSpec((1, mid), lambda n, s: (0, 0)),
            pl.BlockSpec((mid, C), lambda n, s: (0, 0)),
            pl.BlockSpec((1, C), lambda n, s: (0, 0)),
        ],
        out_specs=pl.BlockSpec((1, C), lambda n, s: (n, 0)),
        scratch_shapes=[pltpu.VMEM((1, C), jnp.float32)],
        compiler_params=pltpu.CompilerParams(
            dimension_semantics=("parallel", "arbitrary")),
    )(x2, w1, s1, sh1, w2, b2)

    y = pl.pallas_call(
        _scale_kernel,
        out_shape=jax.ShapeDtypeStruct((N, HW, C), jnp.float32),
        grid=(N, n_s),
        in_specs=[
            pl.BlockSpec((1, ts, C), lambda n, s: (n, s, 0)),
            pl.BlockSpec((1, C), lambda n, s: (n, 0)),
        ],
        out_specs=pl.BlockSpec((1, ts, C), lambda n, s: (n, s, 0)),
        compiler_params=pltpu.CompilerParams(
            dimension_semantics=("parallel", "parallel")),
    )(x2, se)
    return y.reshape(N, H, W, C)


def channelatt_nchw(params, x_nchw, *, two_pass=None):
    """PyTorch-layout entry point: NCHW in, NCHW out."""
    x_nhwc = jnp.transpose(x_nchw, (0, 2, 3, 1))
    y_nhwc = channelatt_nhwc(params, x_nhwc, two_pass=two_pass)
    return jnp.transpose(y_nhwc, (0, 3, 1, 2))


# --------------------------------------------------------------------------- #
# Pure-JAX reference & parameter init
# --------------------------------------------------------------------------- #
def reference_channelatt(params, x_nchw):
    gp = jnp.mean(x_nchw, axis=(2, 3))                          # (N, C)
    s1, sh1 = _folded_affine(params)
    h = jnp.maximum(gp @ params["w1"] * s1 + sh1, 0.0)
    se = jax.nn.sigmoid(h @ params["w2"] + params["b2"])
    return x_nchw * se[:, :, None, None]


def init_channelatt(key, c, decay=2):
    mid = c // decay
    k1, k2, k3, k4 = jax.random.split(key, 4)
    return {
        # Conv2d(C, mid, 1) weight stored transposed as (C, mid) for the matmul.
        "w1": jax.random.normal(k1, (c, mid), jnp.float32) / jnp.sqrt(c),
        "b1": jax.random.normal(k2, (mid,), jnp.float32) * 0.01,
        # Inference-mode BatchNorm2d(mid) parameters / running stats.
        "bn_gamma": jnp.ones((mid,), jnp.float32),
        "bn_beta": jnp.zeros((mid,), jnp.float32),
        "bn_mean": jnp.zeros((mid,), jnp.float32),
        "bn_var": jnp.ones((mid,), jnp.float32),
        # Conv2d(mid, C, 1) weight stored transposed as (mid, C).
        "w2": jax.random.normal(k3, (mid, c), jnp.float32) / jnp.sqrt(mid),
        "b2": jax.random.normal(k4, (c,), jnp.float32) * 0.01,
    }


# --------------------------------------------------------------------------- #
if __name__ == "__main__":
    key = jax.random.PRNGKey(0)
    kp, kx = jax.random.split(key)

    # PyTorch-style NCHW input: batch=2, channels=128 (lane-dense), 16x16 spatial.
    N, C, H, W = 2, 128, 16, 16
    decay = 2
    params = init_channelatt(kp, C, decay)
    x = jax.random.normal(kx, (N, C, H, W), jnp.float32)

    fused = jax.jit(lambda p, a: channelatt_nchw(p, a, two_pass=False))
    tiled = jax.jit(lambda p, a: channelatt_nchw(p, a, two_pass=True))

    y_fused = jax.block_until_ready(fused(params, x))   # fast fused path
    y_tiled = jax.block_until_ready(tiled(params, x))   # VMEM-bounded fallback
    y_ref = reference_channelatt(params, x)

    assert y_fused.shape == (N, C, H, W), y_fused.shape
    assert y_tiled.shape == (N, C, H, W), y_tiled.shape
    assert bool(jnp.all(jnp.isfinite(y_fused)))
    assert bool(jnp.all(jnp.isfinite(y_tiled)))
    err_f = float(jnp.max(jnp.abs(y_fused - y_ref)))
    err_t = float(jnp.max(jnp.abs(y_tiled - y_ref)))
    assert err_f < 2e-2, f"fused path mismatch: {err_f}"
    assert err_t < 2e-2, f"tiled path mismatch: {err_t}"
    print("KERNEL_OK")
</pallas_src>

<mosaic_0001>
module attributes {stable_mosaic.version = 11 : i64} {
  func.func @_channelatt_fused_kernel(%arg0: i32, %arg1: memref<1x256x128xf32, #tpu.memory_space<vmem>>, %arg2: memref<128x64xbf16, #tpu.memory_space<vmem>>, %arg3: memref<1x64xf32, #tpu.memory_space<vmem>>, %arg4: memref<1x64xf32, #tpu.memory_space<vmem>>, %arg5: memref<64x128xbf16, #tpu.memory_space<vmem>>, %arg6: memref<1x128xf32, #tpu.memory_space<vmem>>, %arg7: memref<1x256x128xf32, #tpu.memory_space<vmem>>) attributes {dimension_semantics = [#tpu.dimension_semantics<parallel>], iteration_bounds = array<i64: 2>, scalar_prefetch = 0 : i64, scratch_operands = 0 : i64, tpu.core_type = #tpu.core_type<tc>, window_params = [{transform_indices = @transform_0, window_bounds = array<i64: 1, 256, 128>}, {pipeline_mode = #tpu.pipeline_mode<synchronous>, transform_indices = @transform_1, window_bounds = array<i64: 128, 64>}, {pipeline_mode = #tpu.pipeline_mode<synchronous>, transform_indices = @transform_2, window_bounds = array<i64: 1, 64>}, {pipeline_mode = #tpu.pipeline_mode<synchronous>, transform_indices = @transform_3, window_bounds = array<i64: 1, 64>}, {pipeline_mode = #tpu.pipeline_mode<synchronous>, transform_indices = @transform_4, window_bounds = array<i64: 64, 128>}, {pipeline_mode = #tpu.pipeline_mode<synchronous>, transform_indices = @transform_5, window_bounds = array<i64: 1, 128>}, {transform_indices = @transform_6, window_bounds = array<i64: 1, 256, 128>}]} {
    %c0 = arith.constant 0 : index
    %c0_0 = arith.constant 0 : index
    %c0_1 = arith.constant 0 : index
    %0 = vector.load %arg1[%c0, %c0_0, %c0_1] : memref<1x256x128xf32, #tpu.memory_space<vmem>>, vector<1x256x128xf32>
    %1 = vector.shape_cast %0 : vector<1x256x128xf32> to vector<256x128xf32>
    %cst = arith.constant dense<0.000000e+00> : vector<128xf32>
    %2 = vector.multi_reduction <add>, %1, %cst [0] : vector<256x128xf32> to vector<128xf32>
    %3 = vector.shape_cast %2 : vector<128xf32> to vector<1x128xf32>
    %cst_2 = arith.constant 3.906250e-03 : f32
    %4 = vector.broadcast %cst_2 : f32 to vector<1x128xf32>
    %5 = arith.mulf %3, %4 : vector<1x128xf32>
    %6 = arith.truncf %5 : vector<1x128xf32> to vector<1x128xbf16>
    %c0_3 = arith.constant 0 : index
    %c0_4 = arith.constant 0 : index
    %7 = vector.load %arg2[%c0_3, %c0_4] : memref<128x64xbf16, #tpu.memory_space<vmem>>, vector<128x64xbf16>
    %cst_5 = arith.constant dense<0.000000e+00> : vector<1x64xf32>
    %8 = tpu.matmul %6, %7, %cst_5 {dimension_numbers = #tpu.dot_dimension_numbers<[1], [0], [0], [1], [0, 0, 1, 1], [], []>} : vector<1x128xbf16>, vector<128x64xbf16>, vector<1x64xf32> -> vector<1x64xf32>
    %c0_6 = arith.constant 0 : index
    %c0_7 = arith.constant 0 : index
    %9 = vector.load %arg3[%c0_6, %c0_7] : memref<1x64xf32, #tpu.memory_space<vmem>>, vector<1x64xf32>
    %10 = arith.mulf %8, %9 : vector<1x64xf32>
    %c0_8 = arith.constant 0 : index
    %c0_9 = arith.constant 0 : index
    %11 = vector.load %arg4[%c0_8, %c0_9] : memref<1x64xf32, #tpu.memory_space<vmem>>, vector<1x64xf32>
    %12 = arith.addf %10, %11 : vector<1x64xf32>
    %cst_10 = arith.constant 0.000000e+00 : f32
    %13 = vector.broadcast %cst_10 : f32 to vector<1x64xf32>
    %14 = arith.maximumf %12, %13 : vector<1x64xf32>
    %15 = arith.truncf %14 : vector<1x64xf32> to vector<1x64xbf16>
    %c0_11 = arith.constant 0 : index
    %c0_12 = arith.constant 0 : index
    %16 = vector.load %arg5[%c0_11, %c0_12] : memref<64x128xbf16, #tpu.memory_space<vmem>>, vector<64x128xbf16>
    %cst_13 = arith.constant dense<0.000000e+00> : vector<1x128xf32>
    %17 = tpu.matmul %15, %16, %cst_13 {dimension_numbers = #tpu.dot_dimension_numbers<[1], [0], [0], [1], [0, 0, 1, 1], [], []>} : vector<1x64xbf16>, vector<64x128xbf16>, vector<1x128xf32> -> vector<1x128xf32>
    %c0_14 = arith.constant 0 : index
    %c0_15 = arith.constant 0 : index
    %18 = vector.load %arg6[%c0_14, %c0_15] : memref<1x128xf32, #tpu.memory_space<vmem>>, vector<1x128xf32>
    %19 = arith.addf %17, %18 : vector<1x128xf32>
    %20 = arith.negf %19 : vector<1x128xf32>
    %21 = math.exp %20 : vector<1x128xf32>
    %cst_16 = arith.constant 1.000000e+00 : f32
    %22 = vector.broadcast %cst_16 : f32 to vector<1x128xf32>
    %23 = arith.addf %22, %21 : vector<1x128xf32>
    %24 = arith.divf %22, %23 : vector<1x128xf32>
    %25 = vector.broadcast %24 : vector<1x128xf32> to vector<256x128xf32>
    %26 = arith.mulf %1, %25 : vector<256x128xf32>
    %c0_17 = arith.constant 0 : index
    %c0_18 = arith.constant 0 : index
    %c0_19 = arith.constant 0 : index
    %27 = vector.load %arg7[%c0_17, %c0_18, %c0_19] : memref<1x256x128xf32, #tpu.memory_space<vmem>>, vector<1x256x128xf32>
    %28 = vector.shape_cast %27 : vector<1x256x128xf32> to vector<256x128xf32>
    %29 = vector.shape_cast %26 : vector<256x128xf32> to vector<1x256x128xf32>
    tpu.vector_store %arg7[%c0_17, %c0_18, %c0_19], %29 {strides = array<i32>} : memref<1x256x128xf32, #tpu.memory_space<vmem>>, vector<1x256x128xf32>,
    return
  }
  func.func @transform_0(%arg0: i32) -> (i32, i32, i32) {
    %c0_i32 = arith.constant 0 : i32
    %c0_i32_0 = arith.constant 0 : i32
    %c0_i32_1 = arith.constant 0 : i32
    return %arg0, %c0_i32, %c0_i32_0 : i32, i32, i32
  }
  func.func @transform_1(%arg0: i32) -> (i32, i32) {
    %c0_i32 = arith.constant 0 : i32
    %c0_i32_0 = arith.constant 0 : i32
    %c0_i32_1 = arith.constant 0 : i32
    return %c0_i32, %c0_i32_0 : i32, i32
  }
  func.func @transform_2(%arg0: i32) -> (i32, i32) {
    %c0_i32 = arith.constant 0 : i32
    %c0_i32_0 = arith.constant 0 : i32
    %c0_i32_1 = arith.constant 0 : i32
    return %c0_i32, %c0_i32_0 : i32, i32
  }
  func.func @transform_3(%arg0: i32) -> (i32, i32) {
    %c0_i32 = arith.constant 0 : i32
    %c0_i32_0 = arith.constant 0 : i32
    %c0_i32_1 = arith.constant 0 : i32
    return %c0_i32, %c0_i32_0 : i32, i32
  }
  func.func @transform_4(%arg0: i32) -> (i32, i32) {
    %c0_i32 = arith.constant 0 : i32
    %c0_i32_0 = arith.constant 0 : i32
    %c0_i32_1 = arith.constant 0 : i32
    return %c0_i32, %c0_i32_0 : i32, i32
  }
  func.func @transform_5(%arg0: i32) -> (i32, i32) {
    %c0_i32 = arith.constant 0 : i32
    %c0_i32_0 = arith.constant 0 : i32
    %c0_i32_1 = arith.constant 0 : i32
    return %c0_i32, %c0_i32_0 : i32, i32
  }
  func.func @transform_6(%arg0: i32) -> (i32, i32, i32) {
    %c0_i32 = arith.constant 0 : i32
    %c0_i32_0 = arith.constant 0 : i32
    %c0_i32_1 = arith.constant 0 : i32
    return %arg0, %c0_i32, %c0_i32_0 : i32, i32, i32
  }
}

</mosaic_0001>

<llo_original>
// kernel: _lambda_.1
$region0: #{_lambda_.1}
  #allocation0 [shape = 'u32[]', space=smem, size = 0x4, offset = 0x4, fixed_abs, tag = 'smem constant byte address 0x4 - core index']
  #allocation1 [shape = 'u32[144,128]{1,0:T(1,128)}', space=vmem, size = 0x12000, scoped, tag = 'internal scratch']
  %s0 = inlined_call_operand.hbm [shape: f32[2,256,128], index: 0, kind: input, shape index: {}]
  %s1 = inlined_call_operand.vmem [shape: bf16[128,64], index: 1, kind: input, shape index: {}]
  %s2 = inlined_call_operand.vmem [shape: f32[1,64], index: 2, kind: input, shape index: {}]
  %s3 = inlined_call_operand.vmem [shape: f32[1,64], index: 3, kind: input, shape index: {}]
  %s4 = inlined_call_operand.vmem [shape: bf16[64,128], index: 4, kind: input, shape index: {}]
  %s5 = inlined_call_operand.vmem [shape: f32[1,128], index: 5, kind: input, shape index: {}]
  %s6 = inlined_call_operand.hbm [shape: f32[2,256,128], index: 6, kind: output, shape index: {}]
  %s7 = sld [smem:[#allocation0]]
  $region61: #{_lambda_.1} parent=0
    _
  %s9 = ssub.s32 1, %s7
  %s10 = scalar_select 0, %s9, %s7
  $region1: #{_lambda_.1} parent=0
    #allocation2 [shape = 'u8[262144]{0}', space=vmem, size = 0x40000, scoped, tag = 'input window, operand 0']
    #allocation3 [shape = 's32[2]{0}', space=sflag, size = 0x8, scoped, tag = 'scoped memory for _lambda_.1']
    #allocation4 [shape = 's32[2]{0}', space=sflag, size = 0x8, scoped, tag = 'scoped memory for _lambda_.1']
    #allocation5 [shape = 'u8[262144]{0}', space=vmem, size = 0x40000, scoped, tag = 'output window, operand 0']
    %11 = vsyncpa [#allocation3], 0
    %s12 = scalar_lea.sflag [#allocation3], 1
    %13 = vsyncpa %s12, 0
    %14 = vsyncpa [#allocation4], 0
    %s15 = scalar_lea.sflag [#allocation4], 1
    %16 = vsyncpa %s15, 0
    loop: start=0, step=1, limit=4
    $region2: #{_lambda_.1} parent=1 // loop_pre_header
      _
    $region3: #{_lambda_.1} parent=1 // loop_header
      %s18 = sphi 0, %s22
      %p19 = scmp.ge.s32.totalorder %s18, 4
      %s28 = sphi 0, %s30
      %s31 = sphi 0, %s28
      %s32 = sphi 0, %s31
      %s48 = sphi 0, %s32
      %s52 = sphi 0, %s52
      %s54 = sphi 0, %s52
      %s55 = sphi 0, %s54
      %s69 = sphi 0, %s55
      %s73 = sphi 0, %s73
      %s75 = sphi 0, %s73
      %s76 = sphi 0, %s75
      %s90 = sphi 0, %s76
      %s94 = sphi 0, %s94
      %s96 = sphi 0, %s94
      %s97 = sphi 0, %s96
      %s111 = sphi 0, %s97
      %s115 = sphi 0, %s115
      %s117 = sphi 0, %s115
      %s118 = sphi 0, %s117
      %s132 = sphi 0, %s118
      %s136 = sphi 0, %s136
      %s138 = sphi 0, %s136
      %s139 = sphi 0, %s138
      %s153 = sphi 0, %s139
      %s159 = sphi 0, %s161
      %s162 = sphi 0, %s159
      %s163 = sphi 0, %s162
      %s179 = sphi 0, %s163
    $region4: #{_lambda_.1} parent=1 // loop_header_branch
      %21 = sbr.rel (%p19) target = $region8
    $region5: #{_lambda_.1} parent=1 // loop_body
      %s23 = ssub.s32 %s18, 1
      %s24 = ssub.s32 %s18, 2
      %s25 = sadd.s32 %s18, 1
      %s26 = ssub.s32 %s18, %s25
      %p27 = scmp.eq.s32.totalorder %s26, 0
      %s29 = sadd.s32 %s28, 1
      %s30 = scalar_select %p27, %s28, %s29
      %p33 = pneg %p27
      %p34 = scmp.eq.s32.totalorder %s18, 1
      %p35 = por %p33, %p34
      %p36 = scmp.ne.s32.totalorder %s28, %s31
      %p37 = scmp.eq.s32.totalorder %s18, 0
      %p38 = por %p36, %p37
      %p39 = scmp.ne.s32.totalorder %s28, %s31
      %p40 = scmp.eq.s32.totalorder %s23, 1
      %p41 = por %p39, %p40
      %p42 = scmp.ne.s32.totalorder %s31, %s32
      %p43 = scmp.eq.s32.totalorder %s23, 0
      %p44 = por %p42, %p43
      %p45 = scmp.ne.s32.totalorder %s31, %s32
      %p46 = scmp.eq.s32.totalorder %s24, 1
      %p47 = por %p45, %p46
      %p49 = scmp.ne.s32.totalorder %s32, %s48
      %p50 = scmp.eq.s32.totalorder %s24, 0
      %p51 = por %p49, %p50
      %s53 = sadd.s32 %s52, 1
      %p56 = scmp.eq.s32.totalorder %s18, 1
      %p57 = scmp.ne.s32.totalorder %s52, %s54
      %p58 = scmp.eq.s32.totalorder %s18, 0
      %p59 = por %p57, %p58
      %p60 = scmp.ne.s32.totalorder %s52, %s54
      %p61 = scmp.eq.s32.totalorder %s23, 1
      %p62 = por %p60, %p61
      %p63 = scmp.ne.s32.totalorder %s54, %s55
      %p64 = scmp.eq.s32.totalorder %s23, 0
      %p65 = por %p63, %p64
      %p66 = scmp.ne.s32.totalorder %s54, %s55
      %p67 = scmp.eq.s32.totalorder %s24, 1
      %p68 = por %p66, %p67
      %p70 = scmp.ne.s32.totalorder %s55, %s69
      %p71 = scmp.eq.s32.totalorder %s24, 0
      %p72 = por %p70, %p71
      %s74 = sadd.s32 %s73, 1
      %p77 = scmp.eq.s32.totalorder %s18, 1
      %p78 = scmp.ne.s32.totalorder %s73, %s75
      %p79 = scmp.eq.s32.totalorder %s18, 0
      %p80 = por %p78, %p79
      %p81 = scmp.ne.s32.totalorder %s73, %s75
      %p82 = scmp.eq.s32.totalorder %s23, 1
      %p83 = por %p81, %p82
      %p84 = scmp.ne.s32.totalorder %s75, %s76
      %p85 = scmp.eq.s32.totalorder %s23, 0
      %p86 = por %p84, %p85
      %p87 = scmp.ne.s32.totalorder %s75, %s76
      %p88 = scmp.eq.s32.totalorder %s24, 1
      %p89 = por %p87, %p88
      %p91 = scmp.ne.s32.totalorder %s76, %s90
      %p92 = scmp.eq.s32.totalorder %s24, 0
      %p93 = por %p91, %p92
      %s95 = sadd.s32 %s94, 1
      %p98 = scmp.eq.s32.totalorder %s18, 1
      %p99 = scmp.ne.s32.totalorder %s94, %s96
      %p100 = scmp.eq.s32.totalorder %s18, 0
      %p101 = por %p99, %p100
      %p102 = scmp.ne.s32.totalorder %s94, %s96
      %p103 = scmp.eq.s32.totalorder %s23, 1
      %p104 = por %p102, %p103
      %p105 = scmp.ne.s32.totalorder %s96, %s97
      %p106 = scmp.eq.s32.totalorder %s23, 0
      %p107 = por %p105, %p106
      %p108 = scmp.ne.s32.totalorder %s96, %s97
      %p109 = scmp.eq.s32.totalorder %s24, 1
      %p110 = por %p108, %p109
      %p112 = scmp.ne.s32.totalorder %s97, %s111
      %p113 = scmp.eq.s32.totalorder %s24, 0
      %p114 = por %p112, %p113
      %s116 = sadd.s32 %s115, 1
      %p119 = scmp.eq.s32.totalorder %s18, 1
      %p120 = scmp.ne.s32.totalorder %s115, %s117
      %p121 = scmp.eq.s32.totalorder %s18, 0
      %p122 = por %p120, %p121
      %p123 = scmp.ne.s32.totalorder %s115, %s117
      %p124 = scmp.eq.s32.totalorder %s23, 1
      %p125 = por %p123, %p124
      %p126 = scmp.ne.s32.totalorder %s117, %s118
      %p127 = scmp.eq.s32.totalorder %s23, 0
      %p128 = por %p126, %p127
      %p129 = scmp.ne.s32.totalorder %s117, %s118
      %p130 = scmp.eq.s32.totalorder %s24, 1
      %p131 = por %p129, %p130
      %p133 = scmp.ne.s32.totalorder %s118, %s132
      %p134 = scmp.eq.s32.totalorder %s24, 0
      %p135 = por %p133, %p134
      %s137 = sadd.s32 %s136, 1
      %p140 = scmp.eq.s32.totalorder %s18, 1
      %p141 = scmp.ne.s32.totalorder %s136, %s138
      %p142 = scmp.eq.s32.totalorder %s18, 0
      %p143 = por %p141, %p142
      %p144 = scmp.ne.s32.totalorder %s136, %s138
      %p145 = scmp.eq.s32.totalorder %s23, 1
      %p146 = por %p144, %p145
      %p147 = scmp.ne.s32.totalorder %s138, %s139
      %p148 = scmp.eq.s32.totalorder %s23, 0
      %p149 = por %p147, %p148
      %p150 = scmp.ne.s32.totalorder %s138, %s139
      %p151 = scmp.eq.s32.totalorder %s24, 1
      %p152 = por %p150, %p151
      %p154 = scmp.ne.s32.totalorder %s139, %s153
      %p155 = scmp.eq.s32.totalorder %s24, 0
      %p156 = por %p154, %p155
      %s157 = ssub.s32 %s18, %s25
      %p158 = scmp.eq.s32.totalorder %s157, 0
      %s160 = sadd.s32 %s159, 1
      %s161 = scalar_select %p158, %s159, %s160
      %p164 = pneg %p158
      %p165 = scmp.eq.s32.totalorder %s18, 1
      %p166 = por %p164, %p165
      %p167 = scmp.ne.s32.totalorder %s159, %s162
      %p168 = scmp.eq.s32.totalorder %s18, 0
      %p169 = por %p167, %p168
      %p170 = scmp.ne.s32.totalorder %s159, %s162
      %p171 = scmp.eq.s32.totalorder %s23, 1
      %p172 = por %p170, %p171
      %p173 = scmp.ne.s32.totalorder %s162, %s163
      %p174 = scmp.eq.s32.totalorder %s23, 0
      %p175 = por %p173, %p174
      %p176 = scmp.ne.s32.totalorder %s162, %s163
      %p177 = scmp.eq.s32.totalorder %s24, 1
      %p178 = por %p176, %p177
      %p180 = scmp.ne.s32.totalorder %s163, %s179
      %p181 = scmp.eq.s32.totalorder %s24, 0
      %p182 = por %p180, %p181
      %p183 = scmp.le.s32.totalorder 1, %s18
      %p184 = scmp.lt.s32.totalorder %s18, 3
      %p185 = pnand %p183, %p184
      %p186 = pneg %p185
      // Predicated region
      $region9: #{_lambda_.1} parent=5 // pred_check
        _
      $region10: #{_lambda_.1} parent=5 // pred_check_branch
        %188 = sbr.rel (%p185) target = $region12
      $region11: #{_lambda_.1} parent=5 // pred_region
        %s189 = ssub.s32 %s18, 1
        // Predicated region
        $region13: #{_lambda_.1} parent=11 // pred_check
          %p190 = pneg %p65
        $region14: #{_lambda_.1} parent=11 // pred_check_branch
          %192 = sbr.rel (%p190) target = $region16
        $region15: #{_lambda_.1} parent=11 // pred_region
          _
        $region16: #{_lambda_.1} parent=11 // pred_fallthru
          _
        // Predicated region
        $region17: #{_lambda_.1} parent=11 // pred_check
          %p193 = pneg %p86
        $region18: #{_lambda_.1} parent=11 // pred_check_branch
          %195 = sbr.rel (%p193) target = $region20
        $region19: #{_lambda_.1} parent=11 // pred_region
          _
        $region20: #{_lambda_.1} parent=11 // pred_fallthru
          _
        // Predicated region
        $region21: #{_lambda_.1} parent=11 // pred_check
          %p196 = pneg %p107
        $region22: #{_lambda_.1} parent=11 // pred_check_branch
          %198 = sbr.rel (%p196) target = $region24
        $region23: #{_lambda_.1} parent=11 // pred_region
          _
        $region24: #{_lambda_.1} parent=11 // pred_fallthru
          _
        // Predicated region
        $region25: #{_lambda_.1} parent=11 // pred_check
          %p199 = pneg %p128
        $region26: #{_lambda_.1} parent=11 // pred_check_branch
          %201 = sbr.rel (%p199) target = $region28
        $region27: #{_lambda_.1} parent=11 // pred_region
          _
        $region28: #{_lambda_.1} parent=11 // pred_fallthru
          _
        // Predicated region
        $region29: #{_lambda_.1} parent=11 // pred_check
          %p202 = pneg %p149
        $region30: #{_lambda_.1} parent=11 // pred_check_branch
          %204 = sbr.rel (%p202) target = $region32
        $region31: #{_lambda_.1} parent=11 // pred_region
          _
        $region32: #{_lambda_.1} parent=11 // pred_fallthru
          _
      $region12: #{_lambda_.1} parent=5 // pred_fallthru
        _
      %p205 = scmp.lt.s32.totalorder %s18, 2
      // Predicated region
      $region33: #{_lambda_.1} parent=5 // pred_check
        %p206 = pneg %p205
      $region34: #{_lambda_.1} parent=5 // pred_check_branch
        %208 = sbr.rel (%p206) target = $region36
      $region35: #{_lambda_.1} parent=5 // pred_region
        // Predicated region
        $region37: #{_lambda_.1} parent=35 // pred_check
          %p209 = pneg %p38
        $region38: #{_lambda_.1} parent=35 // pred_check_branch
          %211 = sbr.rel (%p209) target = $region40
        $region39: #{_lambda_.1} parent=35 // pred_region
          %s212 = sand.u32 %s28, 1
          %s213 = scalar_lea.sflag [#allocation3], %s212
          %s214 = sand.u32 %s28, 1
          %s215 = smul.addr %s214, 256
          %s216 = scalar_lea.vmem [#allocation2], %s215
          %s218 = ssub.s32 4096, 4096
          %219 = vsyncadd %s213, %s218
          %s220 = smul.addr %s18, 32
          %s221 = smul.addr %s220, 128
          %s222 = scalar_lea.hbm %s0, %s221
          %s223 = sshll.u32 %s216, 4
          %s224 = int_to_ptr.vmem [resolvable:$true] %s223
          %229 = dma.hbm_to_vmem [thread:$0]  %s222, 4096, %s224, %s213, 128, 128, 8
        $region40: #{_lambda_.1} parent=35 // pred_fallthru
          _
      $region36: #{_lambda_.1} parent=5 // pred_fallthru
        _
      %p230 = scmp.le.s32.totalorder 1, %s18
      %p231 = scmp.lt.s32.totalorder %s18, 3
      %p232 = pnand %p230, %p231
      %p233 = pneg %p232
      // Predicated region
      $region41: #{_lambda_.1} parent=5 // pred_check
        _
      $region42: #{_lambda_.1} parent=5 // pred_check_branch
        %235 = sbr.rel (%p232) target = $region44
      $region43: #{_lambda_.1} parent=5 // pred_region
        %s236 = ssub.s32 %s18, 1
        %s237 = sand.u32 %s31, 1
        %s238 = scalar_lea.sflag [#allocation3], %s237
        %s239 = sand.u32 %s31, 1
        %s240 = smul.addr %s239, 256
        %s241 = scalar_lea.vmem [#allocation2], %s240
        // Predicated region
        $region45: #{_lambda_.1} parent=43 // pred_check
          %p242 = pneg %p44
        $region46: #{_lambda_.1} parent=43 // pred_check_branch
          %244 = sbr.rel (%p242) target = $region48
        $region47: #{_lambda_.1} parent=43 // pred_region
          %245 = dma.done %s238, 4096
        $region48: #{_lambda_.1} parent=43 // pred_fallthru
          _
        %s246 = sand.u32 %s31, 1
        %s247 = scalar_lea.sflag [#allocation3], %s246
        %s248 = sand.u32 %s31, 1
        %s249 = smul.addr %s248, 256
        %s250 = scalar_lea.vmem [#allocation2], %s249
        %p251 = pneg %p44
        %p252 = pneg %p41
        %p253 = pneg %p65
        %p254 = pneg %p62
        %p255 = pneg %p86
        %p256 = pneg %p83
        %p257 = pneg %p107
        %p258 = pneg %p104
        %p259 = pneg %p128
        %p260 = pneg %p125
        %p261 = pneg %p149
        %p262 = pneg %p146
        %p263 = pneg %p175
        %p264 = pneg %p172
        %s265 = sand.u32 %s162, 1
        %s266 = scalar_lea.sflag [#allocation4], %s265
        %s267 = sand.u32 %s162, 1
        %s268 = smul.addr %s267, 256
        %s269 = scalar_lea.vmem [#allocation5], %s268
        %v271 = vld [vmem:[%s241] sm:$0xff]
        %v272 = vld [vmem:[%s241 + $0x8] sm:$0xff]
        %v273 = vld [vmem:[%s241 + $0x10] sm:$0xff]
        %v274 = vld [vmem:[%s241 + $0x18] sm:$0xff]
        %v275 = vld [vmem:[%s241 + $0x20] sm:$0xff]
        %v276 = vld [vmem:[%s241 + $0x28] sm:$0xff]
        %v277 = vld [vmem:[%s241 + $0x30] sm:$0xff]
        %v278 = vld [vmem:[%s241 + $0x38] sm:$0xff]
        %v279 = vld [vmem:[%s241 + $0x40] sm:$0xff]
        %v280 = vld [vmem:[%s241 + $0x48] sm:$0xff]
        %v281 = vld [vmem:[%s241 + $0x50] sm:$0xff]
        %v282 = vld [vmem:[%s241 + $0x58] sm:$0xff]
        %v283 = vld [vmem:[%s241 + $0x60] sm:$0xff]
        %v284 = vld [vmem:[%s241 + $0x68] sm:$0xff]
        %v285 = vld [vmem:[%s241 + $0x70] sm:$0xff]
        %v286 = vld [vmem:[%s241 + $0x78] sm:$0xff]
        %v287 = vld [vmem:[%s241 + $0x80] sm:$0xff]
        %v288 = vld [vmem:[%s241 + $0x88] sm:$0xff]
        %v289 = vld [vmem:[%s241 + $0x90] sm:$0xff]
        %v290 = vld [vmem:[%s241 + $0x98] sm:$0xff]
        %v291 = vld [vmem:[%s241 + $0xa0] sm:$0xff]
        %v292 = vld [vmem:[%s241 + $0xa8] sm:$0xff]
        %v293 = vld [vmem:[%s241 + $0xb0] sm:$0xff]
        %v294 = vld [vmem:[%s241 + $0xb8] sm:$0xff]
        %v295 = vld [vmem:[%s241 + $0xc0] sm:$0xff]
        %v296 = vld [vmem:[%s241 + $0xc8] sm:$0xff]
        %v297 = vld [vmem:[%s241 + $0xd0] sm:$0xff]
        %v298 = vld [vmem:[%s241 + $0xd8] sm:$0xff]
        %v299 = vld [vmem:[%s241 + $0xe0] sm:$0xff]
        %v300 = vld [vmem:[%s241 + $0xe8] sm:$0xff]
        %v301 = vld [vmem:[%s241 + $0xf0] sm:$0xff]
        %v302 = vld [vmem:[%s241 + $0xf8] sm:$0xff]
        %v303 = vadd.f32 %v271, %v272
        %v304 = vadd.f32 %v303, %v273
        %v305 = vadd.f32 %v304, %v274
        %v306 = vadd.f32 %v305, %v275
        %v307 = vadd.f32 %v306, %v276
        %v308 = vadd.f32 %v307, %v277
        %v309 = vadd.f32 %v308, %v278
        %v310 = vadd.f32 %v309, %v279
        %v311 = vadd.f32 %v310, %v280
        %v312 = vadd.f32 %v311, %v281
        %v313 = vadd.f32 %v312, %v282
        %v314 = vadd.f32 %v313, %v283
        %v315 = vadd.f32 %v314, %v284
        %v316 = vadd.f32 %v315, %v285
        %v317 = vadd.f32 %v316, %v286
        %v318 = vadd.f32 %v317, %v287
        %v319 = vadd.f32 %v318, %v288
        %v320 = vadd.f32 %v319, %v289
        %v321 = vadd.f32 %v320, %v290
        %v322 = vadd.f32 %v321, %v291
        %v323 = vadd.f32 %v322, %v292
        %v324 = vadd.f32 %v323, %v293
        %v325 = vadd.f32 %v324, %v294
        %v326 = vadd.f32 %v325, %v295
        %v327 = vadd.f32 %v326, %v296
        %v328 = vadd.f32 %v327, %v297
        %v329 = vadd.f32 %v328, %v298
        %v330 = vadd.f32 %v329, %v299
        %v331 = vadd.f32 %v330, %v300
        %v332 = vadd.f32 %v331, %v301
        %v333 = vadd.f32 %v332, %v302
        %v334 = vrot.slane %v333, 4
        %v335 = vadd.f32 %v333, %v334
        %v336 = vrot.slane %v335, 2
        %v337 = vadd.f32 %v335, %v336
        %v338 = vrot.slane %v337, 1
        %v339 = vadd.f32 %v337, %v338
        %v340 = vmul.f32 %v339, 0.00390625
        %v341 = vpack.c.bf16 %v340, %v340
        %v342 = vld [vmem:[%s1] sm:$0xf]
        %v343 = vld [vmem:[%s1 + $0x4] sm:$0xf]
        %v344 = vld [vmem:[%s1 + $0x8] sm:$0xf]
        %v345 = vld [vmem:[%s1 + $0xc] sm:$0xf]
        %v346 = vld [vmem:[%s1 + $0x10] sm:$0xf]
        %v347 = vld [vmem:[%s1 + $0x14] sm:$0xf]
        %v348 = vld [vmem:[%s1 + $0x18] sm:$0xf]
        %v349 = vld [vmem:[%s1 + $0x1c] sm:$0xf]
        %v350 = vld [vmem:[%s1 + $0x20] sm:$0xf]
        %v351 = vld [vmem:[%s1 + $0x24] sm:$0xf]
        %v352 = vld [vmem:[%s1 + $0x28] sm:$0xf]
        %v353 = vld [vmem:[%s1 + $0x2c] sm:$0xf]
        %v354 = vld [vmem:[%s1 + $0x30] sm:$0xf]
        %v355 = vld [vmem:[%s1 + $0x34] sm:$0xf]
        %v356 = vld [vmem:[%s1 + $0x38] sm:$0xf]
        %v357 = vld [vmem:[%s1 + $0x3c] sm:$0xf]
        %v374 = vunpack.c.l.b16 %v342
        %v375 = vunpack.c.l.b16 %v343
        %v376 = vunpack.c.l.b16 %v344
        %v377 = vunpack.c.l.b16 %v345
        %v378 = vunpack.c.l.b16 %v346
        %v379 = vunpack.c.l.b16 %v347
        %v380 = vunpack.c.l.b16 %v348
        %v381 = vunpack.c.l.b16 %v349
        %v382 = vunpack.c.l.b16 %v350
        %v383 = vunpack.c.l.b16 %v351
        %v384 = vunpack.c.l.b16 %v352
        %v385 = vunpack.c.l.b16 %v353
        %v386 = vunpack.c.l.b16 %v354
        %v387 = vunpack.c.l.b16 %v355
        %v388 = vunpack.c.l.b16 %v356
        %v389 = vunpack.c.l.b16 %v357
        %v390 = vpack.c.b16 %v375, %v374
        %v391 = vpack.c.b16 %v377, %v376
        %v392 = vpack.c.b16 %v379, %v378
        %v393 = vpack.c.b16 %v381, %v380
        %v394 = vpack.c.b16 %v383, %v382
        %v395 = vpack.c.b16 %v385, %v384
        %v396 = vpack.c.b16 %v387, %v386
        %v397 = vpack.c.b16 %v389, %v388
        %406 = vmatprep.subr.bf16.mxu0 0
        %407 = vmatpush1.bf16.msra.mxu0 %v390
        %408 = vmatprep.subr.bf16.mxu0 0
        %409 = vmatpush1.bf16.msra.mxu0 %v391
        %410 = vmatprep.subr.bf16.mxu0 0
        %411 = vmatpush1.bf16.msra.mxu0 %v392
        %412 = vmatprep.subr.bf16.mxu0 0
        %413 = vmatpush1.bf16.msra.mxu0 %v393
        %414 = vmatprep.subr.bf16.mxu0 0
        %415 = vmatpush1.bf16.msra.mxu0 %v394
        %416 = vmatprep.subr.bf16.mxu0 0
        %417 = vmatpush1.bf16.msra.mxu0 %v395
        %418 = vmatprep.subr.bf16.mxu0 0
        %419 = vmatpush1.bf16.msra.mxu0 %v396
        %420 = vmatprep.subr.bf16.mxu0 0
        %421 = vmatpush1.bf16.msra.mxu0 %v397
        %422 = vmatprep.subr.bf16.mxu0 0
        %423 = vmatpush1.bf16.msra.mxu0 0
        %424 = vmatprep.subr.bf16.mxu0 0
        %425 = vmatpush1.bf16.msra.mxu0 0
        %426 = vmatprep.subr.bf16.mxu0 0
        %427 = vmatpush1.bf16.msra.mxu0 0
        %428 = vmatprep.subr.bf16.mxu0 0
        %429 = vmatpush1.bf16.msra.mxu0 0
        %430 = vmatprep.subr.bf16.mxu0 0
        %431 = vmatpush1.bf16.msra.mxu0 0
        %432 = vmatprep.subr.bf16.mxu0 0
        %433 = vmatpush1.bf16.msra.mxu0 0
        %434 = vmatprep.subr.bf16.mxu0 0
        %435 = vmatpush1.bf16.msra.mxu0 0
        %436 = vmatprep.subr.bf16.mxu0 0
        %437 = vmatpush1.bf16.msra.mxu0 0
        %438 = vmatprep.mubr.bf16.mxu0 0
        %439 = vmatmul.mubr.bf16.gmra.mrb[0].mxu0 %v341
        %v440 = vpop.f32.mrb[0].mxu0
        %v441 = vadd.f32 0.0, %v440
        %v442 = vpop.f32.mrb[0].mxu0
        %v443 = vpop.f32.mrb[0].mxu0
        %v444 = vpop.f32.mrb[0].mxu0
        %445 = vdwg.mxu0
        %v446 = vld [vmem:[%s2] sm:$0x1]
        %v447 = vmul.f32 %v441, %v446
        %v448 = vld [vmem:[%s3] sm:$0x1]
        %v449 = vadd.f32 %v447, %v448
        %v450 = vmax.f32 %v449, 0.0
        %v451 = vpack.c.bf16 %v450, %v450
        %v452 = vld [vmem:[%s4] sm:$0xf]
        %v453 = vld [vmem:[%s4 + $0x4] sm:$0xf]
        %v454 = vld [vmem:[%s4 + $0x8] sm:$0xf]
        %v455 = vld [vmem:[%s4 + $0xc] sm:$0xf]
        %v456 = vld [vmem:[%s4 + $0x10] sm:$0xf]
        %v457 = vld [vmem:[%s4 + $0x14] sm:$0xf]
        %v458 = vld [vmem:[%s4 + $0x18] sm:$0xf]
        %v459 = vld [vmem:[%s4 + $0x1c] sm:$0xf]
        %v460 = vld [vmem:[%s5] sm:$0x1]
        %v469 = vunpack.c.l.b16 %v452
        %v470 = vunpack.c.l.b16 %v453
        %v471 = vunpack.c.l.b16 %v454
        %v472 = vunpack.c.l.b16 %v455
        %v473 = vunpack.c.l.b16 %v456
        %v474 = vunpack.c.l.b16 %v457
        %v475 = vunpack.c.l.b16 %v458
        %v476 = vunpack.c.l.b16 %v459
        %v477 = vpack.c.b16 %v470, %v469
        %v478 = vpack.c.b16 %v472, %v471
        %v479 = vpack.c.b16 %v474, %v473
        %v480 = vpack.c.b16 %v476, %v475
        %vm485 = vcmask 523264
        %v487 = vsel %vm485, %v451, 0
        %489 = vmatprep.subr.bf16.mxu0 0
        %490 = vmatpush1.bf16.msra.mxu0 %v477
        %491 = vmatprep.subr.bf16.mxu0 0
        %492 = vmatpush1.bf16.msra.mxu0 %v478
        %493 = vmatprep.subr.bf16.mxu0 0
        %494 = vmatpush1.bf16.msra.mxu0 %v479
        %495 = vmatprep.subr.bf16.mxu0 0
        %496 = vmatpush1.bf16.msra.mxu0 %v480
        %497 = vmatprep.subr.bf16.mxu0 0
        %498 = vmatpush1.bf16.msra.mxu0 0
        %499 = vmatprep.subr.bf16.mxu0 0
        %500 = vmatpush1.bf16.msra.mxu0 0
        %501 = vmatprep.subr.bf16.mxu0 0
        %502 = vmatpush1.bf16.msra.mxu0 0
        %503 = vmatprep.subr.bf16.mxu0 0
        %504 = vmatpush1.bf16.msra.mxu0 0
        %505 = vmatprep.subr.bf16.mxu0 0
        %506 = vmatpush1.bf16.msra.mxu0 0
        %507 = vmatprep.subr.bf16.mxu0 0
        %508 = vmatpush1.bf16.msra.mxu0 0
        %509 = vmatprep.subr.bf16.mxu0 0
        %510 = vmatpush1.bf16.msra.mxu0 0
        %511 = vmatprep.subr.bf16.mxu0 0
        %512 = vmatpush1.bf16.msra.mxu0 0
        %513 = vmatprep.subr.bf16.mxu0 0
        %514 = vmatpush1.bf16.msra.mxu0 0
        %515 = vmatprep.subr.bf16.mxu0 0
        %516 = vmatpush1.bf16.msra.mxu0 0
        %517 = vmatprep.subr.bf16.mxu0 0
        %518 = vmatpush1.bf16.msra.mxu0 0
        %519 = vmatprep.subr.bf16.mxu0 0
        %520 = vmatpush1.bf16.msra.mxu0 0
        %521 = vmatprep.mubr.bf16.mxu0 0
        %522 = vmatmul.mubr.bf16.gmra.mrb[0].mxu0 %v487
        %v523 = vpop.f32.mrb[0].mxu0
        %v524 = vadd.f32 %v460, %v523
        %v525 = vpop.f32.mrb[0].mxu0
        %v526 = vpop.f32.mrb[0].mxu0
        %v527 = vpop.f32.mrb[0].mxu0
        %528 = vdwg.mxu0
        %v529 = vxor.u32 %v524, 2147483648
        %v530 = vmul.f32 %v529, 1.442695
        %v531 = vpow.pop %v530
        %v532 = vadd.f32 %v531, 1.0
        %v533 = vrcp.pop %v532
        %v534 = vmul.f32 1.0, %v533
        %v535 = vlaneseq
        %v536 = vshrl.u32 %v535, 7
        %v537 = vsub.s32 0, %v536
        %v538 = vrot.slane %v534, %v537
        %v539 = vmul.f32 %v271, %v538
        %v540 = vmul.f32 %v272, %v538
        %v541 = vmul.f32 %v273, %v538
        %v542 = vmul.f32 %v274, %v538
        %v543 = vmul.f32 %v275, %v538
        %v544 = vmul.f32 %v276, %v538
        %v545 = vmul.f32 %v277, %v538
        %v546 = vmul.f32 %v278, %v538
        %v547 = vmul.f32 %v279, %v538
        %v548 = vmul.f32 %v280, %v538
        %v549 = vmul.f32 %v281, %v538
        %v550 = vmul.f32 %v282, %v538
        %v551 = vmul.f32 %v283, %v538
        %v552 = vmul.f32 %v284, %v538
        %v553 = vmul.f32 %v285, %v538
        %v554 = vmul.f32 %v286, %v538
        %v555 = vmul.f32 %v287, %v538
        %v556 = vmul.f32 %v288, %v538
        %v557 = vmul.f32 %v289, %v538
        %v558 = vmul.f32 %v290, %v538
        %v559 = vmul.f32 %v291, %v538
        %v560 = vmul.f32 %v292, %v538
        %v561 = vmul.f32 %v293, %v538
        %v562 = vmul.f32 %v294, %v538
        %v563 = vmul.f32 %v295, %v538
        %v564 = vmul.f32 %v296, %v538
        %v565 = vmul.f32 %v297, %v538
        %v566 = vmul.f32 %v298, %v538
        %v567 = vmul.f32 %v299, %v538
        %v568 = vmul.f32 %v300, %v538
        %v569 = vmul.f32 %v301, %v538
        %v570 = vmul.f32 %v302, %v538
        %571 = vst [vmem:[%s269] sm:$0xff] %v539
        %572 = vst [vmem:[%s269 + $0x8] sm:$0xff] %v540
        %573 = vst [vmem:[%s269 + $0x10] sm:$0xff] %v541
        %574 = vst [vmem:[%s269 + $0x18] sm:$0xff] %v542
        %575 = vst [vmem:[%s269 + $0x20] sm:$0xff] %v543
        %576 = vst [vmem:[%s269 + $0x28] sm:$0xff] %v544
        %577 = vst [vmem:[%s269 + $0x30] sm:$0xff] %v545
        %578 = vst [vmem:[%s269 + $0x38] sm:$0xff] %v546
        %579 = vst [vmem:[%s269 + $0x40] sm:$0xff] %v547
        %580 = vst [vmem:[%s269 + $0x48] sm:$0xff] %v548
        %581 = vst [vmem:[%s269 + $0x50] sm:$0xff] %v549
        %582 = vst [vmem:[%s269 + $0x58] sm:$0xff] %v550
        %583 = vst [vmem:[%s269 + $0x60] sm:$0xff] %v551
        %584 = vst [vmem:[%s269 + $0x68] sm:$0xff] %v552
        %585 = vst [vmem:[%s269 + $0x70] sm:$0xff] %v553
        %586 = vst [vmem:[%s269 + $0x78] sm:$0xff] %v554
        %587 = vst [vmem:[%s269 + $0x80] sm:$0xff] %v555
        %588 = vst [vmem:[%s269 + $0x88] sm:$0xff] %v556
        %589 = vst [vmem:[%s269 + $0x90] sm:$0xff] %v557
        %590 = vst [vmem:[%s269 + $0x98] sm:$0xff] %v558
        %591 = vst [vmem:[%s269 + $0xa0] sm:$0xff] %v559
        %592 = vst [vmem:[%s269 + $0xa8] sm:$0xff] %v560
        %593 = vst [vmem:[%s269 + $0xb0] sm:$0xff] %v561
        %594 = vst [vmem:[%s269 + $0xb8] sm:$0xff] %v562
        %595 = vst [vmem:[%s269 + $0xc0] sm:$0xff] %v563
        %596 = vst [vmem:[%s269 + $0xc8] sm:$0xff] %v564
        %597 = vst [vmem:[%s269 + $0xd0] sm:$0xff] %v565
        %598 = vst [vmem:[%s269 + $0xd8] sm:$0xff] %v566
        %599 = vst [vmem:[%s269 + $0xe0] sm:$0xff] %v567
        %600 = vst [vmem:[%s269 + $0xe8] sm:$0xff] %v568
        %601 = vst [vmem:[%s269 + $0xf0] sm:$0xff] %v569
        %602 = vst [vmem:[%s269 + $0xf8] sm:$0xff] %v570
        %s603 = sand.u32 %s162, 1
        %s604 = scalar_lea.sflag [#allocation4], %s603
        %s605 = sand.u32 %s162, 1
        %s606 = smul.addr %s605, 256
        %s607 = scalar_lea.vmem [#allocation5], %s606
        // Predicated region
        $region49: #{_lambda_.1} parent=43 // pred_check
          %p608 = pneg %p172
        $region50: #{_lambda_.1} parent=43 // pred_check_branch
          %610 = sbr.rel (%p608) target = $region52
        $region51: #{_lambda_.1} parent=43 // pred_region
          %s612 = ssub.s32 4096, 4096
          %613 = vsyncadd %s604, %s612
          %s614 = smul.addr %s23, 32
          %s615 = smul.addr %s614, 128
          %s616 = scalar_lea.hbm %s6, %s615
          %s617 = sshll.u32 %s607, 4
          %s618 = int_to_ptr.vmem [resolvable:$true] %s617
          %623 = dma.vmem_to_hbm [thread:$0]  %s618, 4096, %s616, %s604, 128, 128, 8
        $region52: #{_lambda_.1} parent=43 // pred_fallthru
          _
      $region44: #{_lambda_.1} parent=5 // pred_fallthru
        _
      %p624 = scmp.le.s32.totalorder 2, %s18
      // Predicated region
      $region53: #{_lambda_.1} parent=5 // pred_check
        %p625 = pneg %p624
      $region54: #{_lambda_.1} parent=5 // pred_check_branch
        %627 = sbr.rel (%p625) target = $region56
      $region55: #{_lambda_.1} parent=5 // pred_region
        %s628 = ssub.s32 %s18, 2
        // Predicated region
        $region57: #{_lambda_.1} parent=55 // pred_check
          %p629 = pneg %p178
        $region58: #{_lambda_.1} parent=55 // pred_check_branch
          %631 = sbr.rel (%p629) target = $region60
        $region59: #{_lambda_.1} parent=55 // pred_region
          %s632 = sand.u32 %s163, 1
          %s633 = scalar_lea.sflag [#allocation4], %s632
          %s634 = sand.u32 %s163, 1
          %s635 = smul.addr %s634, 256
          %s636 = scalar_lea.vmem [#allocation5], %s635
          %637 = dma.done %s633, 4096
        $region60: #{_lambda_.1} parent=55 // pred_fallthru
          _
      $region56: #{_lambda_.1} parent=5 // pred_fallthru
        _
    $region6: #{_lambda_.1} parent=1 // loop_footer
      %s22 = sadd.s32 1, %s18
    $region7: #{_lambda_.1} parent=1 // loop_footer_branch
      %17 = sbr.rel target = $region3
    $region8: #{_lambda_.1} parent=1 // loop_exit
      _
    %638 = vsyncpa [#allocation3], 1
    %s639 = scalar_lea.sflag [#allocation3], 1
    %640 = vsyncpa %s639, 1
    %641 = vsyncpa [#allocation4], 1
    %s642 = scalar_lea.sflag [#allocation4], 1
    %643 = vsyncpa %s642, 1

</llo_original>
